<compile_context>
chip_gen: v7x
topology: tpu7x:2x2x1
jax: 0.10.0
libtpu: 0.0.40
codegen_flags: <defaults>
</compile_context>

<pallas_src>
import jax
import jax.numpy as jnp
from jax.experimental import pallas as pl
from jax.experimental.pallas import tpu as pltpu


def _round_up(x, m):
    return (x + m - 1) // m * m


def _pick_tn(h_pad, k, budget_bytes=8 << 20):
    """Largest lane-aligned hidden tile whose double-buffered fused-weight tile
    (K x 4*tn f32, x2 buffers) stays comfortably inside scoped VMEM."""
    for tn in (512, 256, 128):
        if h_pad % tn == 0 and 2 * k * 4 * tn * 4 <= budget_bytes:
            return tn
    return 128


def gru_cell_kernel(xh_ref, h_ref, w_ref, b_ref, out_ref):
    """One (batch-tile, hidden-tile) cell of the GRU update.

    xh_ref : (tb, I+H)        concatenated [x | h] activations
    h_ref  : (tb, tn)         hidden-state slice for the final blend
    w_ref  : (1, I+H, 4*tn)   fused weights, column groups [z | r | cx | ch]
    b_ref  : (1, 1, 4*tn)     fused biases  [bz+bhz | br+bhr | bc | bhc]
    out_ref: (tb, tn)
    """
    tn = out_ref.shape[-1]
    xh = xh_ref[...]
    h = h_ref[...]

    # Single wide MXU pass, f32 accumulation.
    g = jnp.dot(xh, w_ref[0], preferred_element_type=jnp.float32) + b_ref[0]

    # Lane-aligned slices (tn is a multiple of 128); sigmoid/tanh ride the EUP.
    z = jax.nn.sigmoid(g[:, 0 * tn:1 * tn])
    r = jax.nn.sigmoid(g[:, 1 * tn:2 * tn])
    cx = g[:, 2 * tn:3 * tn]           # x @ Wc  + b_c
    ch = g[:, 3 * tn:4 * tn]           # h @ Whc + b_hc
    cand = jnp.tanh(cx + r * ch)

    # h + z*(cand - h) == (1 - z)*h + z*cand, one VPU multiply cheaper.
    out_ref[...] = (h + z * (cand - h)).astype(out_ref.dtype)


def prepare_gru_params(params, *, dtype=jnp.float32):
    """One-time re-layout of PyTorch-style GRUCell params into the fused,
    tiled, (in, out)-major slab the kernel consumes.  Call once, not per step.

    NOTE: on v6e/v7x pass dtype=jnp.bfloat16 to halve weight HBM traffic
    (accumulation stays f32).  Default f32 preserves the 1e-5 tolerance.
    """
    w_ih, b_ih = params["weight_ih"], params["bias_ih"]                      # (2H, I), (2H,)
    w_hh, b_hh = params["weight_hh"], params["bias_hh"]                      # (2H, H), (2H,)
    w_c, b_c = params["weight_candidate"], params["bias_candidate"]          # (H, I), (H,)
    w_hc, b_hc = params["weight_hh_candidate"], params["bias_hh_candidate"]  # (H, H), (H,)

    H = w_hh.shape[1]
    I = w_ih.shape[1]
    K = I + H
    H_pad = _round_up(H, 128)
    tn = _pick_tn(H_pad, K)
    n_tiles = H_pad // tn
    f32 = jnp.float32

    def pad_cols(w):                      # (rows, H) -> (rows, H_pad)
        return jnp.pad(w.astype(f32), ((0, 0), (0, H_pad - H)))

    def pad_vec(b):                       # (H,) -> (H_pad,)
        return jnp.pad(b.astype(f32), (0, H_pad - H))

    wiz, wir = w_ih[:H].T, w_ih[H:].T     # (I, H)
    whz, whr = w_hh[:H].T, w_hh[H:].T     # (H, H)
    wc, whc = w_c.T, w_hc.T               # (I, H), (H, H)

    # Column groups [ z | r | cand_x | cand_h ].  Zero blocks keep the x-only /
    # h-only candidate projections separate so r multiplies only the h part.
    x_rows = jnp.concatenate(
        [pad_cols(wiz), pad_cols(wir), pad_cols(wc),
         jnp.zeros((I, H_pad), f32)], axis=1)                                # (I, 4*H_pad)
    h_rows = jnp.concatenate(
        [pad_cols(whz), pad_cols(whr), jnp.zeros((H, H_pad), f32),
         pad_cols(whc)], axis=1)                                             # (H, 4*H_pad)
    w_full = jnp.concatenate([x_rows, h_rows], axis=0)                       # (K, 4*H_pad)

    b_full = jnp.concatenate(
        [pad_vec(b_ih[:H] + b_hh[:H]),      # z bias (fused before sigmoid)
         pad_vec(b_ih[H:] + b_hh[H:]),      # r bias
         pad_vec(b_c),                      # candidate-x bias
         pad_vec(b_hc)])                    # candidate-h bias               # (4*H_pad,)

    # Re-tile so each output tile j gets a contiguous [z_j|r_j|cx_j|ch_j] slab.
    w_tiled = (w_full.reshape(K, 4, n_tiles, tn)
               .transpose(2, 0, 1, 3)
               .reshape(n_tiles, K, 4 * tn)).astype(dtype)
    b_tiled = (b_full.reshape(4, n_tiles, tn)
               .transpose(1, 0, 2)
               .reshape(n_tiles, 1, 4 * tn)).astype(f32)

    return {
        "w": w_tiled, "b": b_tiled,
        "input_size": I, "hidden_size": H, "hidden_pad": H_pad, "tn": tn,
    }


def gru_cell(x, hx, prep):
    """Pallas GRUCell forward. x: (B, I), hx: (B, H) -> (B, H)."""
    B, I = x.shape
    H = prep["hidden_size"]
    assert I == prep["input_size"] and hx.shape == (B, H)
    H_pad, tn = prep["hidden_pad"], prep["tn"]
    K = I + H
    n_tiles = H_pad // tn

    # Batch tiling: sublane-pad to 8, cap the batch tile at 128 rows.
    if B <= 128:
        B_pad = _round_up(B, 8)
        tb = B_pad
    else:
        tb = 128
        B_pad = _round_up(B, tb)

    w_dtype = prep["w"].dtype
    xh = jnp.concatenate([x.astype(w_dtype), hx.astype(w_dtype)], axis=1)    # (B, K)
    xh = jnp.pad(xh, ((0, B_pad - B), (0, 0)))                               # (B_pad, K)
    h_full = jnp.pad(hx.astype(jnp.float32),
                     ((0, B_pad - B), (0, H_pad - H)))                       # (B_pad, H_pad)

    grid = (B_pad // tb, n_tiles)

    out = pl.pallas_call(
        gru_cell_kernel,
        out_shape=jax.ShapeDtypeStruct((B_pad, H_pad), jnp.float32),
        grid_spec=pltpu.PrefetchScalarGridSpec(
            num_scalar_prefetch=0,
            grid=grid,
            in_specs=[
                pl.BlockSpec((tb, K), lambda i, j: (i, 0)),            # [x|h]
                pl.BlockSpec((tb, tn), lambda i, j: (i, j)),           # h slice
                pl.BlockSpec((1, K, 4 * tn), lambda i, j: (j, 0, 0)),  # fused W tile
                pl.BlockSpec((1, 1, 4 * tn), lambda i, j: (j, 0, 0)),  # fused bias
            ],
            out_specs=pl.BlockSpec((tb, tn), lambda i, j: (i, j)),
        ),
        compiler_params=pltpu.CompilerParams(
            dimension_semantics=("parallel", "parallel"),
            vmem_limit_bytes=32 * 1024 * 1024,
        ),
        # Recurrent use: new hidden state overwrites the (padded) old one.
        input_output_aliases={1: 0},
    )(xh, h_full, prep["w"], prep["b"])

    return out[:B, :H].astype(hx.dtype)


def gru_cell_ref(x, hx, params):
    """Pure-JAX reference matching the PyTorch module semantics."""
    H = hx.shape[1]
    gates = (x @ params["weight_ih"].T + params["bias_ih"]
             + hx @ params["weight_hh"].T + params["bias_hh"])
    gates = jax.nn.sigmoid(gates)
    z_t, r_t = gates[:, :H], gates[:, H:]
    cand = jnp.tanh(x @ params["weight_candidate"].T + params["bias_candidate"]
                    + r_t * (hx @ params["weight_hh_candidate"].T
                             + params["bias_hh_candidate"]))
    return (1.0 - z_t) * hx + z_t * cand


def init_params(key, input_size, hidden_size, dtype=jnp.float32):
    ks = jax.random.split(key, 8)

    def uniform(k, shape, fan_in):
        bound = 1.0 / jnp.sqrt(fan_in)
        return jax.random.uniform(k, shape, dtype, -bound, bound)

    return {
        "weight_ih": uniform(ks[0], (2 * hidden_size, input_size), input_size),
        "bias_ih": uniform(ks[1], (2 * hidden_size,), input_size),
        "weight_hh": uniform(ks[2], (2 * hidden_size, hidden_size), hidden_size),
        "bias_hh": uniform(ks[3], (2 * hidden_size,), hidden_size),
        "weight_candidate": uniform(ks[4], (hidden_size, input_size), input_size),
        "bias_candidate": uniform(ks[5], (hidden_size,), input_size),
        "weight_hh_candidate": uniform(ks[6], (hidden_size, hidden_size), hidden_size),
        "bias_hh_candidate": uniform(ks[7], (hidden_size,), hidden_size),
    }


if __name__ == "__main__":
    key = jax.random.PRNGKey(0)
    k_p, k_x, k_h = jax.random.split(key, 3)

    batch, input_size, hidden_size = 8, 16, 32
    params = init_params(k_p, input_size, hidden_size)
    x = jax.random.normal(k_x, (batch, input_size), jnp.float32)
    hx = jax.random.normal(k_h, (batch, hidden_size), jnp.float32)

    # One-time weight re-layout (hoisted out of the per-step path).
    prep = jax.tree_util.tree_map(jax.block_until_ready,
                                  prepare_gru_params(params))

    out = gru_cell(x, hx, prep)
    out = jax.block_until_ready(out)

    ref = gru_cell_ref(x, hx, params)
    assert out.shape == (batch, hidden_size)
    assert jnp.allclose(out, ref, atol=1e-5, rtol=1e-5), "mismatch vs reference"

    print("KERNEL_OK")
</pallas_src>

<mosaic_0001>
module attributes {stable_mosaic.version = 11 : i64} {
  func.func @gru_cell_kernel(%arg0: i32, %arg1: i32, %arg2: memref<8x48xf32, #tpu.memory_space<vmem>>, %arg3: memref<8x128xf32, #tpu.memory_space<vmem>>, %arg4: memref<1x48x512xf32, #tpu.memory_space<vmem>>, %arg5: memref<1x1x512xf32, #tpu.memory_space<vmem>>, %arg6: memref<8x128xf32, #tpu.memory_space<vmem>>) attributes {dimension_semantics = [#tpu.dimension_semantics<parallel>, #tpu.dimension_semantics<parallel>], iteration_bounds = array<i64: 1, 1>, scalar_prefetch = 0 : i64, scratch_operands = 0 : i64, tpu.core_type = #tpu.core_type<tc>, window_params = [{transform_indices = @transform_0, window_bounds = array<i64: 8, 48>}, {transform_indices = @transform_1, window_bounds = array<i64: 8, 128>}, {transform_indices = @transform_2, window_bounds = array<i64: 1, 48, 512>}, {transform_indices = @transform_3, window_bounds = array<i64: 1, 1, 512>}, {transform_indices = @transform_4, window_bounds = array<i64: 8, 128>}]} {
    %c0 = arith.constant 0 : index
    %c0_0 = arith.constant 0 : index
    %0 = vector.load %arg2[%c0, %c0_0] : memref<8x48xf32, #tpu.memory_space<vmem>>, vector<8x48xf32>
    %c0_1 = arith.constant 0 : index
    %c0_2 = arith.constant 0 : index
    %1 = vector.load %arg3[%c0_1, %c0_2] : memref<8x128xf32, #tpu.memory_space<vmem>>, vector<8x128xf32>
    %c0_3 = arith.constant 0 : index
    %c0_4 = arith.constant 0 : index
    %c0_5 = arith.constant 0 : index
    %2 = vector.load %arg4[%c0_3, %c0_4, %c0_5] : memref<1x48x512xf32, #tpu.memory_space<vmem>>, vector<1x48x512xf32>
    %3 = vector.shape_cast %2 : vector<1x48x512xf32> to vector<48x512xf32>
    %cst = arith.constant dense<0.000000e+00> : vector<8x512xf32>
    %4 = tpu.matmul %0, %3, %cst {dimension_numbers = #tpu.dot_dimension_numbers<[1], [0], [0], [1], [0, 0, 1, 1], [], []>} : vector<8x48xf32>, vector<48x512xf32>, vector<8x512xf32> -> vector<8x512xf32>
    %c0_6 = arith.constant 0 : index
    %c0_7 = arith.constant 0 : index
    %c0_8 = arith.constant 0 : index
    %5 = vector.load %arg5[%c0_6, %c0_7, %c0_8] : memref<1x1x512xf32, #tpu.memory_space<vmem>>, vector<1x1x512xf32>
    %6 = vector.shape_cast %5 : vector<1x1x512xf32> to vector<1x512xf32>
    %7 = vector.broadcast %6 : vector<1x512xf32> to vector<8x512xf32>
    %8 = arith.addf %4, %7 : vector<8x512xf32>
    %9 = vector.extract_strided_slice %8 {offsets = [0, 0], sizes = [8, 128], strides = [1, 1]} : vector<8x512xf32> to vector<8x128xf32>
    %10 = arith.negf %9 : vector<8x128xf32>
    %11 = math.exp %10 : vector<8x128xf32>
    %cst_9 = arith.constant 1.000000e+00 : f32
    %12 = vector.broadcast %cst_9 : f32 to vector<8x128xf32>
    %13 = arith.addf %12, %11 : vector<8x128xf32>
    %14 = arith.divf %12, %13 : vector<8x128xf32>
    %15 = vector.extract_strided_slice %8 {offsets = [0, 128], sizes = [8, 128], strides = [1, 1]} : vector<8x512xf32> to vector<8x128xf32>
    %16 = arith.negf %15 : vector<8x128xf32>
    %17 = math.exp %16 : vector<8x128xf32>
    %cst_10 = arith.constant 1.000000e+00 : f32
    %18 = vector.broadcast %cst_10 : f32 to vector<8x128xf32>
    %19 = arith.addf %18, %17 : vector<8x128xf32>
    %20 = arith.divf %18, %19 : vector<8x128xf32>
    %21 = vector.extract_strided_slice %8 {offsets = [0, 256], sizes = [8, 128], strides = [1, 1]} : vector<8x512xf32> to vector<8x128xf32>
    %22 = vector.extract_strided_slice %8 {offsets = [0, 384], sizes = [8, 128], strides = [1, 1]} : vector<8x512xf32> to vector<8x128xf32>
    %23 = arith.mulf %20, %22 : vector<8x128xf32>
    %24 = arith.addf %21, %23 : vector<8x128xf32>
    %25 = math.tanh %24 : vector<8x128xf32>
    %26 = arith.subf %25, %1 : vector<8x128xf32>
    %27 = arith.mulf %14, %26 : vector<8x128xf32>
    %28 = arith.addf %1, %27 : vector<8x128xf32>
    %c0_11 = arith.constant 0 : index
    %c0_12 = arith.constant 0 : index
    %29 = vector.load %arg6[%c0_11, %c0_12] : memref<8x128xf32, #tpu.memory_space<vmem>>, vector<8x128xf32>
    tpu.vector_store %arg6[%c0_11, %c0_12], %28 {strides = array<i32>} : memref<8x128xf32, #tpu.memory_space<vmem>>, vector<8x128xf32>,
    return
  }
  func.func @transform_0(%arg0: i32, %arg1: i32) -> (i32, i32) {
    %c0_i32 = arith.constant 0 : i32
    %c0_i32_0 = arith.constant 0 : i32
    return %arg0, %c0_i32 : i32, i32
  }
  func.func @transform_1(%arg0: i32, %arg1: i32) -> (i32, i32) {
    %c0_i32 = arith.constant 0 : i32
    return %arg0, %arg1 : i32, i32
  }
  func.func @transform_2(%arg0: i32, %arg1: i32) -> (i32, i32, i32) {
    %c0_i32 = arith.constant 0 : i32
    %c0_i32_0 = arith.constant 0 : i32
    %c0_i32_1 = arith.constant 0 : i32
    return %arg1, %c0_i32, %c0_i32_0 : i32, i32, i32
  }
  func.func @transform_3(%arg0: i32, %arg1: i32) -> (i32, i32, i32) {
    %c0_i32 = arith.constant 0 : i32
    %c0_i32_0 = arith.constant 0 : i32
    %c0_i32_1 = arith.constant 0 : i32
    return %arg1, %c0_i32, %c0_i32_0 : i32, i32, i32
  }
  func.func @transform_4(%arg0: i32, %arg1: i32) -> (i32, i32) {
    %c0_i32 = arith.constant 0 : i32
    return %arg0, %arg1 : i32, i32
  }
}

</mosaic_0001>

<llo_original>
// kernel: tpu_custom_call.1
$region0: #{tpu_custom_call.1}
  #allocation0 [shape = 'u32[]', space=smem, size = 0x4, offset = 0x4, fixed_abs, tag = 'smem constant byte address 0x4 - core index']
  #allocation1 [shape = 'u32[144,128]{1,0:T(1,128)}', space=vmem, size = 0x12000, scoped, tag = 'internal scratch']
  %s0 = inlined_call_operand.vmem [shape: f32[8,48], index: 0, kind: input, shape index: {}]
  %s1 = inlined_call_operand.hbm [shape: f32[8,128], index: 1, kind: input, shape index: {}, may-alias: {1,4}]
  %s2 = inlined_call_operand.hbm [shape: f32[1,48,512], index: 2, kind: input, shape index: {}]
  %s3 = inlined_call_operand.vmem [shape: f32[1,1,512], index: 3, kind: input, shape index: {}]
  %s4 = inlined_call_operand.hbm [shape: f32[8,128], index: 4, kind: output, shape index: {}, may-alias: {1,4}]
  %s5 = sld [smem:[#allocation0]]
  $region34: #{tpu_custom_call.1} parent=0
    _
  %s7 = ssub.s32 1, %s5
  %s8 = scalar_select 0, %s7, %s5
  $region1: #{tpu_custom_call.1} parent=0
    #allocation2 [shape = 'u8[4096]{0}', space=vmem, size = 0x1000, scoped, tag = 'input window, operand 1, single buffered']
    #allocation3 [shape = 's32[1]{0}', space=sflag, size = 0x4, scoped, tag = 'scoped memory for tpu_custom_call.1']
    #allocation4 [shape = 's32[1]{0}', space=sflag, size = 0x4, scoped, tag = 'scoped memory for tpu_custom_call.1']
    #allocation5 [shape = 'u8[98304]{0}', space=vmem, size = 0x18000, scoped, tag = 'input window, operand 2, single buffered']
    #allocation6 [shape = 's32[1]{0}', space=sflag, size = 0x4, scoped, tag = 'scoped memory for tpu_custom_call.1']
    #allocation7 [shape = 'u8[4096]{0}', space=vmem, size = 0x1000, scoped, tag = 'output window, operand 0, single buffered']
    %9 = vsyncpa [#allocation3], 0
    %10 = vsyncpa [#allocation6], 0
    %11 = vsyncpa [#allocation4], 0
    // Predicated region
    $region2: #{tpu_custom_call.1} parent=1 // pred_check
      _
    $region3: #{tpu_custom_call.1} parent=1 // pred_check_branch
      %13 = sbr.rel (0) target = $region5
    $region4: #{tpu_custom_call.1} parent=1 // pred_region
      _
    $region5: #{tpu_custom_call.1} parent=1 // pred_fallthru
      _
    // Predicated region
    $region6: #{tpu_custom_call.1} parent=1 // pred_check
      _
    $region7: #{tpu_custom_call.1} parent=1 // pred_check_branch
      %15 = sbr.rel (0) target = $region9
    $region8: #{tpu_custom_call.1} parent=1 // pred_region
      %s17 = ssub.s32 128, 128
      %18 = vsyncadd [#allocation3], %s17
      %s20 = sshll.u32 [#allocation2], 4
      %s21 = int_to_ptr.vmem [resolvable:$true] %s20
      %23 = dma.hbm_to_vmem [thread:$0]  %s1, 128, %s21, [#allocation3]
    $region9: #{tpu_custom_call.1} parent=1 // pred_fallthru
      _
    // Predicated region
    $region10: #{tpu_custom_call.1} parent=1 // pred_check
      _
    $region11: #{tpu_custom_call.1} parent=1 // pred_check_branch
      %25 = sbr.rel (0) target = $region13
    $region12: #{tpu_custom_call.1} parent=1 // pred_region
      %s27 = ssub.s32 3072, 3072
      %28 = vsyncadd [#allocation6], %s27
      %s29 = sshll.u32 [#allocation5], 4
      %s30 = int_to_ptr.vmem [resolvable:$true] %s29
      %35 = dma.hbm_to_vmem [thread:$0]  %s2, 3072, %s30, [#allocation6], 512, 512, 32
    $region13: #{tpu_custom_call.1} parent=1 // pred_fallthru
      _
    // Predicated region
    $region14: #{tpu_custom_call.1} parent=1 // pred_check
      _
    $region15: #{tpu_custom_call.1} parent=1 // pred_check_branch
      %37 = sbr.rel (0) target = $region17
    $region16: #{tpu_custom_call.1} parent=1 // pred_region
      _
    $region17: #{tpu_custom_call.1} parent=1 // pred_fallthru
      _
    // Predicated region
    $region18: #{tpu_custom_call.1} parent=1 // pred_check
      _
    $region19: #{tpu_custom_call.1} parent=1 // pred_check_branch
      %39 = sbr.rel (0) target = $region21
    $region20: #{tpu_custom_call.1} parent=1 // pred_region
      %40 = dma.done [#allocation3], 128
    $region21: #{tpu_custom_call.1} parent=1 // pred_fallthru
      _
    // Predicated region
    $region22: #{tpu_custom_call.1} parent=1 // pred_check
      _
    $region23: #{tpu_custom_call.1} parent=1 // pred_check_branch
      %42 = sbr.rel (0) target = $region25
    $region24: #{tpu_custom_call.1} parent=1 // pred_region
      %43 = dma.done [#allocation6], 3072
    $region25: #{tpu_custom_call.1} parent=1 // pred_fallthru
      _
    %v44 = vld [vmem:[%s0] sm:$0xff]
    %v45 = vld [vmem:[#allocation2] sm:$0xff]
    %v46 = vld [vmem:[#allocation5] sm:$0xff]
    %v47 = vld [vmem:[#allocation5 + $0x8] sm:$0xff]
    %v48 = vld [vmem:[#allocation5 + $0x10] sm:$0xff]
    %v49 = vld [vmem:[#allocation5 + $0x18] sm:$0xff]
    %v50 = vld [vmem:[#allocation5 + $0x20] sm:$0xff]
    %v51 = vld [vmem:[#allocation5 + $0x28] sm:$0xff]
    %v52 = vld [vmem:[#allocation5 + $0x30] sm:$0xff]
    %v53 = vld [vmem:[#allocation5 + $0x38] sm:$0xff]
    %v54 = vld [vmem:[#allocation5 + $0x40] sm:$0xff]
    %v55 = vld [vmem:[#allocation5 + $0x48] sm:$0xff]
    %v56 = vld [vmem:[#allocation5 + $0x50] sm:$0xff]
    %v57 = vld [vmem:[#allocation5 + $0x58] sm:$0xff]
    %v58 = vld [vmem:[#allocation5 + $0x60] sm:$0xff]
    %v59 = vld [vmem:[#allocation5 + $0x68] sm:$0xff]
    %v60 = vld [vmem:[#allocation5 + $0x70] sm:$0xff]
    %v61 = vld [vmem:[#allocation5 + $0x78] sm:$0xff]
    %v62 = vld [vmem:[#allocation5 + $0x80] sm:$0xff]
    %v63 = vld [vmem:[#allocation5 + $0x88] sm:$0xff]
    %v64 = vld [vmem:[#allocation5 + $0x90] sm:$0xff]
    %v65 = vld [vmem:[#allocation5 + $0x98] sm:$0xff]
    %v66 = vld [vmem:[#allocation5 + $0xa0] sm:$0xff]
    %v67 = vld [vmem:[#allocation5 + $0xa8] sm:$0xff]
    %v68 = vld [vmem:[#allocation5 + $0xb0] sm:$0xff]
    %v69 = vld [vmem:[#allocation5 + $0xb8] sm:$0xff]
    %v70 = vld [vmem:[%s3] sm:$0xf]
    %v72 = vlaneseq
    %v73 = vshrl.u32 %v72, 7
    %v74 = vsub.s32 0, %v73
    %v75 = vrot.slane %v70, %v74
    %v76 = vlaneseq
    %v77 = vshrl.u32 %v76, 7
    %v78 = vsub.s32 1, %v77
    %v79 = vrot.slane %v70, %v78
    %v80 = vlaneseq
    %v81 = vshrl.u32 %v80, 7
    %v82 = vsub.s32 2, %v81
    %v83 = vrot.slane %v70, %v82
    %v84 = vlaneseq
    %v85 = vshrl.u32 %v84, 7
    %v86 = vsub.s32 3, %v85
    %v87 = vrot.slane %v70, %v86
    %vm92 = vcmask 392192
    %v94 = vsel %vm92, %v44, 0
    %96 = vmatprep.subr.mxu0 %v47
    %97 = vmatpush1.msra.mxu0 %v46
    %98 = vmatprep.subr.mxu0 %v51
    %99 = vmatpush1.msra.mxu0 %v50
    %100 = vmatprep.subr.mxu0 %v55
    %101 = vmatpush1.msra.mxu0 %v54
    %102 = vmatprep.subr.mxu0 %v59
    %103 = vmatpush1.msra.mxu0 %v58
    %104 = vmatprep.subr.mxu0 %v63
    %105 = vmatpush1.msra.mxu0 %v62
    %106 = vmatprep.subr.mxu0 %v67
    %107 = vmatpush1.msra.mxu0 %v66
    %108 = vmatprep.subr.mxu0 0.0
    %109 = vmatpush1.msra.mxu0 0.0
    %110 = vmatprep.subr.mxu0 0.0
    %111 = vmatpush1.msra.mxu0 0.0
    %112 = vmatprep.subr.mxu0 0.0
    %113 = vmatpush1.msra.mxu0 0.0
    %114 = vmatprep.subr.mxu0 0.0
    %115 = vmatpush1.msra.mxu0 0.0
    %116 = vmatprep.subr.mxu0 0.0
    %117 = vmatpush1.msra.mxu0 0.0
    %118 = vmatprep.subr.mxu0 0.0
    %119 = vmatpush1.msra.mxu0 0.0
    %120 = vmatprep.subr.mxu0 0.0
    %121 = vmatpush1.msra.mxu0 0.0
    %122 = vmatprep.subr.mxu0 0.0
    %123 = vmatpush1.msra.mxu0 0.0
    %124 = vmatprep.subr.mxu0 0.0
    %125 = vmatpush1.msra.mxu0 0.0
    %126 = vmatprep.subr.mxu0 0.0
    %127 = vmatpush1.msra.mxu0 0.0
    %128 = vmatprep.subr.mxu0 0.0
    %129 = vmatpush1.msra.mxu0 0.0
    %130 = vmatprep.subr.mxu0 0.0
    %131 = vmatpush1.msra.mxu0 0.0
    %132 = vmatprep.subr.mxu0 0.0
    %133 = vmatpush1.msra.mxu0 0.0
    %134 = vmatprep.subr.mxu0 0.0
    %135 = vmatpush1.msra.mxu0 0.0
    %136 = vmatprep.subr.mxu0 0.0
    %137 = vmatpush1.msra.mxu0 0.0
    %138 = vmatprep.subr.mxu0 0.0
    %139 = vmatpush1.msra.mxu0 0.0
    %140 = vmatprep.subr.mxu0 0.0
    %141 = vmatpush1.msra.mxu0 0.0
    %142 = vmatprep.subr.mxu0 0.0
    %143 = vmatpush1.msra.mxu0 0.0
    %144 = vmatprep.subr.mxu0 0.0
    %145 = vmatpush1.msra.mxu0 0.0
    %146 = vmatprep.subr.mxu0 0.0
    %147 = vmatpush1.msra.mxu0 0.0
    %148 = vmatprep.subr.mxu0 0.0
    %149 = vmatpush1.msra.mxu0 0.0
    %150 = vmatprep.subr.mxu0 0.0
    %151 = vmatpush1.msra.mxu0 0.0
    %152 = vmatprep.subr.mxu0 0.0
    %153 = vmatpush1.msra.mxu0 0.0
    %154 = vmatprep.subr.mxu0 0.0
    %155 = vmatpush1.msra.mxu0 0.0
    %156 = vmatprep.subr.mxu0 0.0
    %157 = vmatpush1.msra.mxu0 0.0
    %158 = vmatprep.subr.mxu0 0.0
    %159 = vmatpush1.msra.mxu0 0.0
    %160 = vmatprep.mubr.f32.mxu0 0.0
    %161 = vmatmul.mubr.f32.gmra.mrb[0].mxu0 %v94
    %v162 = vpop.f32.mrb[0].mxu0
    %v163 = vadd.f32 %v75, %v162
    %v164 = vpop.f32.mrb[0].mxu0
    %v165 = vadd.f32 %v79, %v164
    %166 = vdwg.mxu0
    %167 = vmatprep.subr.mxu0 %v49
    %168 = vmatpush1.msra.mxu0 %v48
    %169 = vmatprep.subr.mxu0 %v53
    %170 = vmatpush1.msra.mxu0 %v52
    %171 = vmatprep.subr.mxu0 %v57
    %172 = vmatpush1.msra.mxu0 %v56
    %173 = vmatprep.subr.mxu0 %v61
    %174 = vmatpush1.msra.mxu0 %v60
    %175 = vmatprep.subr.mxu0 %v65
    %176 = vmatpush1.msra.mxu0 %v64
    %177 = vmatprep.subr.mxu0 %v69
    %178 = vmatpush1.msra.mxu0 %v68
    %179 = vmatprep.subr.mxu0 0.0
    %180 = vmatpush1.msra.mxu0 0.0
    %181 = vmatprep.subr.mxu0 0.0
    %182 = vmatpush1.msra.mxu0 0.0
    %183 = vmatprep.subr.mxu0 0.0
    %184 = vmatpush1.msra.mxu0 0.0
    %185 = vmatprep.subr.mxu0 0.0
    %186 = vmatpush1.msra.mxu0 0.0
    %187 = vmatprep.subr.mxu0 0.0
    %188 = vmatpush1.msra.mxu0 0.0
    %189 = vmatprep.subr.mxu0 0.0
    %190 = vmatpush1.msra.mxu0 0.0
    %191 = vmatprep.subr.mxu0 0.0
    %192 = vmatpush1.msra.mxu0 0.0
    %193 = vmatprep.subr.mxu0 0.0
    %194 = vmatpush1.msra.mxu0 0.0
    %195 = vmatprep.subr.mxu0 0.0
    %196 = vmatpush1.msra.mxu0 0.0
    %197 = vmatprep.subr.mxu0 0.0
    %198 = vmatpush1.msra.mxu0 0.0
    %199 = vmatprep.subr.mxu0 0.0
    %200 = vmatpush1.msra.mxu0 0.0
    %201 = vmatprep.subr.mxu0 0.0
    %202 = vmatpush1.msra.mxu0 0.0
    %203 = vmatprep.subr.mxu0 0.0
    %204 = vmatpush1.msra.mxu0 0.0
    %205 = vmatprep.subr.mxu0 0.0
    %206 = vmatpush1.msra.mxu0 0.0
    %207 = vmatprep.subr.mxu0 0.0
    %208 = vmatpush1.msra.mxu0 0.0
    %209 = vmatprep.subr.mxu0 0.0
    %210 = vmatpush1.msra.mxu0 0.0
    %211 = vmatprep.subr.mxu0 0.0
    %212 = vmatpush1.msra.mxu0 0.0
    %213 = vmatprep.subr.mxu0 0.0
    %214 = vmatpush1.msra.mxu0 0.0
    %215 = vmatprep.subr.mxu0 0.0
    %216 = vmatpush1.msra.mxu0 0.0
    %217 = vmatprep.subr.mxu0 0.0
    %218 = vmatpush1.msra.mxu0 0.0
    %219 = vmatprep.subr.mxu0 0.0
    %220 = vmatpush1.msra.mxu0 0.0
    %221 = vmatprep.subr.mxu0 0.0
    %222 = vmatpush1.msra.mxu0 0.0
    %223 = vmatprep.subr.mxu0 0.0
    %224 = vmatpush1.msra.mxu0 0.0
    %225 = vmatprep.subr.mxu0 0.0
    %226 = vmatpush1.msra.mxu0 0.0
    %227 = vmatprep.subr.mxu0 0.0
    %228 = vmatpush1.msra.mxu0 0.0
    %229 = vmatprep.subr.mxu0 0.0
    %230 = vmatpush1.msra.mxu0 0.0
    %231 = vmatprep.mubr.f32.mxu0 0.0
    %232 = vmatmul.mubr.f32.gmra.mrb[0].mxu0 %v94
    %v233 = vpop.f32.mrb[0].mxu0
    %v234 = vadd.f32 %v83, %v233
    %v235 = vpop.f32.mrb[0].mxu0
    %v236 = vadd.f32 %v87, %v235
    %237 = vdwg.mxu0
    %v238 = vxor.u32 %v163, 2147483648
    %v239 = vmul.f32 %v238, 1.442695
    %v240 = vpow.pop %v239
    %v241 = vadd.f32 %v240, 1.0
    %v242 = vrcp.pop %v241
    %v243 = vmul.f32 1.0, %v242
    %v244 = vxor.u32 %v165, 2147483648
    %v245 = vmul.f32 %v244, 1.442695
    %v246 = vpow.pop %v245
    %v247 = vadd.f32 %v246, 1.0
    %v248 = vrcp.pop %v247
    %v249 = vmul.f32 1.0, %v248
    %v250 = vmul.f32 %v249, %v236
    %v251 = vadd.f32 %v234, %v250
    %v252 = vtanh.pop %v251
    %v253 = vsub.f32 %v252, %v45
    %v254 = vmul.f32 %v243, %v253
    %v255 = vadd.f32 %v45, %v254
    %256 = vst [vmem:[#allocation7] sm:$0xff] %v255
    // Predicated region
    $region26: #{tpu_custom_call.1} parent=1 // pred_check
      _
    $region27: #{tpu_custom_call.1} parent=1 // pred_check_branch
      %258 = sbr.rel (0) target = $region29
    $region28: #{tpu_custom_call.1} parent=1 // pred_region
      %s260 = ssub.s32 128, 128
      %261 = vsyncadd [#allocation4], %s260
      %s263 = sshll.u32 [#allocation7], 4
      %s264 = int_to_ptr.vmem [resolvable:$true] %s263
      %266 = dma.vmem_to_hbm [thread:$0]  %s264, 128, %s4, [#allocation4]
    $region29: #{tpu_custom_call.1} parent=1 // pred_fallthru
      _
    // Predicated region
    $region30: #{tpu_custom_call.1} parent=1 // pred_check
      _
    $region31: #{tpu_custom_call.1} parent=1 // pred_check_branch
      %268 = sbr.rel (0) target = $region33
    $region32: #{tpu_custom_call.1} parent=1 // pred_region
      %269 = dma.done [#allocation4], 128
    $region33: #{tpu_custom_call.1} parent=1 // pred_fallthru
      _
    %270 = vsyncpa [#allocation3], 1
    %271 = vsyncpa [#allocation6], 1
    %272 = vsyncpa [#allocation4], 1

</llo_original>
